<compile_context>
chip_gen: v5e
topology: v5e:2x2
jax: 0.10.0
libtpu: 0.0.40
codegen_flags: <defaults>
</compile_context>

<pallas_src>
import functools
import math

import jax
import jax.numpy as jnp
from jax.experimental import pallas as pl
from jax.experimental.pallas import tpu as pltpu


MARGIN = 1.0
ALPHA_CONTR = 0.01
MIN_VAL = 1e-8


def _vmem_capacity_bytes():
    """Per-core VMEM capacity; conservative 64 MiB (v7x-class) fallback."""
    try:
        return int(pltpu.get_tpu_info().vmem_capacity_bytes)
    except Exception:
        return 64 << 20


def _pick_tiles(bs, span, K, itemsize, tile_cap_bytes):
    """Pick (ti, tj, bs_pad).

    * tiles are multiples of 8 whenever bs >= 8 (sublane friendly),
    * ti is capped so the i grid has >= 2 steps (megacore split on v7x),
    * ti divides tj and bs is padded up to a multiple of tj (padding waste
      <= ~25% preferred), so awkward batch sizes never degrade to tiny tiles.
    """
    per_ij = max(1, span * K * itemsize)
    cap_elems = max(1, tile_cap_bytes // per_ij)          # cap on ti * tj
    t_cap = max(1, int(math.isqrt(cap_elems)))
    u = 8 if bs >= 8 else 1
    t_cap = max(u, (t_cap // u) * u)
    hi = min(t_cap, ((bs + u - 1) // u) * u)

    tj = None
    best = None
    for c in range(hi, u - 1, -u):
        bp = ((bs + c - 1) // c) * c
        if best is None or bp < best[0]:
            best = (bp, c)
        if bp * 4 <= bs * 5:                              # padding waste <= 25%
            tj = c
            break
    if tj is None:
        tj = best[1]
    bs_pad = ((bs + tj - 1) // tj) * tj

    ti_cap = max(1, min(tj,
                        bs_pad // 2 if bs_pad >= 2 else 1,
                        cap_elems // tj))
    ti = 1
    for d in range(ti_cap, 0, -1):                        # largest divisor of tj
        if tj % d == 0:
            ti = d
            break
    return ti, tj, bs_pad


# ---------------------------------------------------------------------------
# Pass 1 (batched): diag[b, s] = max_k atten[b, b, s, k]
# Reads (TB, TB, span, K) diagonal-neighborhood blocks (~TB/bs of the cube)
# instead of bs tiny per-row DMAs, then selects the in-tile diagonal.
# ---------------------------------------------------------------------------
def _diag_kernel(atten_ref, diag_ref):
    tb = atten_ref.shape[0]
    span = atten_ref.shape[2]
    # K-max in the native dtype (bit-identical to pass 2); cast afterwards.
    scores = jnp.max(atten_ref[...], axis=-1).astype(jnp.float32)   # (TB,TB,span)
    rows = jax.lax.broadcasted_iota(jnp.int32, (tb, tb, span), 0)
    cols = jax.lax.broadcasted_iota(jnp.int32, (tb, tb, span), 1)
    ondiag = jnp.where(rows == cols, scores, 0.0)
    diag_ref[...] = jnp.sum(ondiag, axis=1)                          # (TB, span)


# ---------------------------------------------------------------------------
# Pass 2: unmasked weighted hinge sum over one (ti, tj) tile of the batch
# cube, accumulated into a lane-vector partial resident across the j axis.
# ---------------------------------------------------------------------------
def _tile_kernel(atten_ref, rowside_ref, colside_ref, part_ref, *, margin, min_val):
    j = pl.program_id(1)

    @pl.when(j == 0)
    def _():
        part_ref[...] = jnp.zeros_like(part_ref)

    ti, tj, span, k = atten_ref.shape
    g = tj * span
    # Flatten (tj, span) -> tj*span BEFORE the K-reduction so every subsequent
    # elementwise op is lane-dense; the K-max stays in the NATIVE dtype and is
    # cast to f32 only after the reduction.
    # TODO(synk): for sub-32-bit atten dtypes check via pl.lower_as_mlir that
    # this reshape does not materialize a relayout copy (span < 16 sublanes).
    atten = atten_ref[...].reshape(ti, g, k)
    scores = jnp.max(atten, axis=-1).astype(jnp.float32)             # (ti, g)

    d1 = rowside_ref[0, 0]                                           # (ti, g)
    w1 = rowside_ref[1, 0]                                           # (ti, g)
    d2 = colside_ref[0, 0]                                           # (1, g)
    w2 = colside_ref[1, 0]                                           # (1, g)

    hinge_txt = jnp.maximum(margin + scores - d1, min_val)           # row anchor
    hinge_img = jnp.maximum(margin + scores - d2, min_val)           # col anchor
    contrib = w1 * hinge_txt + w2 * hinge_img                        # (ti, g)

    # Sublane-only reduction per step; the cross-lane reduction happens once
    # in the epilogue (jnp.sum(partials)).
    part_ref[...] += jnp.sum(contrib, axis=0)[None, None, :]


def contrastive_loss(batch, inside_s, outside_s, all_atten_score,
                     margin=MARGIN, alpha_contr=ALPHA_CONTR, min_val=MIN_VAL):
    """JAX/Pallas equivalent of ContrastiveLoss.forward.

    batch:           (bs, seq_len)      -- only supplies bs, as in torch
    inside_s:        (bs, span, 1)
    outside_s:       (bs, span, 1)
    all_atten_score: (bs, bs, span, K)  -- DMA'd in its native dtype
    Returns (loss_scalar, {'contrastive_loss': loss_scalar}).
    """
    bs, _ = batch.shape
    b0, b1, span, K = all_atten_score.shape
    assert b0 == bs and b1 == bs
    itemsize = jnp.dtype(all_atten_score.dtype).itemsize

    # ---- generation-aware VMEM budget / tile sizing -------------------------
    vmem_cap = _vmem_capacity_bytes()
    # v7x-class (64 MiB VMEM/TC, XLU-bound): ~4-8 MiB atten tiles.
    # v5e/v6e (128 MiB VMEM, HBM-bound): 16 MiB tiles amortize per-step cost.
    tile_cap_bytes = (6 << 20) if vmem_cap <= (80 << 20) else (16 << 20)
    ti, tj, bs_pad = _pick_tiles(bs, span, K, itemsize, tile_cap_bytes)
    n_i, n_j = bs_pad // ti, bs_pad // tj
    G = tj * span
    pad = bs_pad - bs

    # ---- zero-pad batch axes so tiles always divide evenly ------------------
    atten = all_atten_score
    if pad > 0:
        atten = jnp.pad(atten, ((0, pad), (0, pad), (0, 0), (0, 0)))

    # ---- span weights: zeroed for s >= span//2 and for padded rows ----------
    inside = jnp.squeeze(inside_s, axis=-1).astype(jnp.float32)      # (bs, span)
    outside = jnp.squeeze(outside_s, axis=-1).astype(jnp.float32)
    span_margs = jnp.exp(inside + outside - inside[:, -1:])
    col_mask = (jnp.arange(span) < (span // 2)).astype(jnp.float32)
    w = span_margs * col_mask[None, :]                               # (bs, span)
    if pad > 0:
        w = jnp.pad(w, ((0, pad), (0, 0)))                           # (bs_pad, span)

    # ---- pass 1: diagonal scores (batched diagonal walk) --------------------
    TB = 8 if bs_pad % 8 == 0 else bs_pad
    diag = pl.pallas_call(
        _diag_kernel,
        grid=(bs_pad // TB,),
        in_specs=[pl.BlockSpec((TB, TB, span, K), lambda b: (b, b, 0, 0))],
        out_specs=pl.BlockSpec((TB, span), lambda b: (b, 0)),
        out_shape=jax.ShapeDtypeStruct((bs_pad, span), jnp.float32),
        compiler_params=pltpu.CompilerParams(
            dimension_semantics=("parallel",)),
    )(atten)

    # ---- side inputs precomputed lane-dense (hoists per-step jnp.tile) ------
    # rowside[c, ib, r, col*span+s] = diag/w[ib*ti + r, s]   (row anchors)
    # colside[c, jb, 0, col*span+s] = diag/w[jb*tj + col, s] (col anchors)
    d_row = jnp.tile(diag, (1, tj))                                  # (bs_pad, G)
    w_row = jnp.tile(w, (1, tj))
    rowside = jnp.stack([d_row, w_row]).reshape(2, n_i, ti, G)
    colside = jnp.stack([diag.reshape(n_j, 1, G), w.reshape(n_j, 1, G)])

    # ---- pass 2: tiled (i, j) sweep over the full score cube ----------------
    tile_bytes = ti * tj * span * K * itemsize
    need = 2 * tile_bytes + 4 * ti * G * 4 + (4 << 20)               # dbl-buffered
    vmem_limit = int(min(need + (8 << 20), int(0.8 * vmem_cap)))
    vmem_limit = max(vmem_limit, 16 << 20)

    kernel = functools.partial(_tile_kernel, margin=margin, min_val=min_val)
    partials = pl.pallas_call(
        kernel,
        grid=(n_i, n_j),
        in_specs=[
            pl.BlockSpec((ti, tj, span, K), lambda i, j: (i, j, 0, 0)),
            pl.BlockSpec((2, 1, ti, G), lambda i, j: (0, i, 0, 0)),   # row side
            pl.BlockSpec((2, 1, 1, G), lambda i, j: (0, j, 0, 0)),    # col side
        ],
        out_specs=pl.BlockSpec((1, 1, G), lambda i, j: (i, 0, 0)),
        out_shape=jax.ShapeDtypeStruct((n_i, 1, G), jnp.float32),
        compiler_params=pltpu.CompilerParams(
            dimension_semantics=("parallel", "arbitrary"),
            vmem_limit_bytes=vmem_limit),
    )(atten, rowside, colside)

    # ---- tiny scalar epilogue (plain-JAX glue) -------------------------------
    unmasked_total = jnp.sum(partials)
    # i == j (real) terms: scores[i,i,s] is bit-identical to diag[i,s] (same
    # order-invariant max over K of the same data), so each term is exactly
    # w[i,s]*max(margin, min_val), counted twice (txt + img).
    diag_corr = 2.0 * jnp.maximum(margin, min_val) * jnp.sum(w)
    # Zero-padded rows/cols: scores == 0 there and only the real-side weight
    # survives, contributing max(margin - diag, min_val) per real (b, s),
    # `pad` times on each side.
    pad_corr = 2.0 * float(pad) * jnp.sum(w * jnp.maximum(margin - diag, min_val))
    loss = (unmasked_total - diag_corr - pad_corr) * (alpha_contr / float(bs * bs))
    return loss, {'contrastive_loss': loss}


def _reference(inside_s, outside_s, all_atten_score,
               margin=MARGIN, alpha_contr=ALPHA_CONTR, min_val=MIN_VAL):
    """Plain-JAX straight translation of the torch forward, for verification."""
    inside = jnp.squeeze(inside_s, -1).astype(jnp.float32)
    outside = jnp.squeeze(outside_s, -1).astype(jnp.float32)
    bs = all_atten_score.shape[0]
    span = inside.shape[1]

    scores = jnp.max(all_atten_score.astype(jnp.float32), -1)   # (bs, bs, span)
    scores = jnp.transpose(scores, (2, 0, 1))                   # (span, bs, bs)
    diagonal = jnp.diagonal(scores, 0, -1, 1)[..., None]        # (span, bs, 1)
    d1 = jnp.broadcast_to(diagonal, scores.shape)
    d2 = jnp.broadcast_to(jnp.swapaxes(diagonal, 1, 2), scores.shape)
    loss_txt = jnp.maximum(margin + scores - d1, min_val)       # clamp(min=..)
    loss_img = jnp.maximum(margin + scores - d2, min_val)
    I = jnp.broadcast_to((jnp.eye(bs) > 0.5)[None], scores.shape)
    loss_txt = jnp.where(I, 0.0, loss_txt)
    loss_img = jnp.where(I, 0.0, loss_img)
    loss_txt = jnp.mean(loss_txt, 2)
    loss_img = jnp.mean(loss_img, 1)
    vl_loss = (loss_txt + loss_img).T                           # (bs, span)
    span_margs = jnp.exp(inside + outside - inside[:, -1:])
    loss_mat = span_margs * vl_loss
    return jnp.mean(jnp.sum(loss_mat[:, :span // 2], -1)) * alpha_contr


if __name__ == "__main__":
    key = jax.random.PRNGKey(0)

    def run_case(case_key, bs, seq_len, span, K):
        k_batch, k_in, k_out, k_att = jax.random.split(case_key, 4)
        batch = jax.random.randint(k_batch, (bs, seq_len), 0, 100)  # shape only
        inside_s = jax.random.normal(k_in, (bs, span, 1), jnp.float32)
        outside_s = jax.random.normal(k_out, (bs, span, 1), jnp.float32)
        atten = jax.random.normal(k_att, (bs, bs, span, K), jnp.float32)

        loss, _ = contrastive_loss(batch, inside_s, outside_s, atten)
        loss = jax.block_until_ready(loss)
        ref = jax.block_until_ready(_reference(inside_s, outside_s, atten))
        assert jnp.allclose(loss, ref, rtol=2e-5, atol=1e-6), (bs, loss, ref)

    k0, k1 = jax.random.split(key)
    run_case(k0, bs=4, seq_len=8, span=8, K=128)    # exact-tile path
    run_case(k1, bs=12, seq_len=8, span=8, K=128)   # padded + megacore-split path
    print("KERNEL_OK")
</pallas_src>

<mosaic_0001>
module attributes {stable_mosaic.version = 11 : i64} {
  func.func @_diag_kernel(%arg0: i32, %arg1: memref<4x4x8x128xf32, #tpu.memory_space<vmem>>, %arg2: memref<4x8xf32, #tpu.memory_space<vmem>>) attributes {dimension_semantics = [#tpu.dimension_semantics<parallel>], iteration_bounds = array<i64: 1>, scalar_prefetch = 0 : i64, scratch_operands = 0 : i64, tpu.core_type = #tpu.core_type<tc>, window_params = [{transform_indices = @transform_0, window_bounds = array<i64: 4, 4, 8, 128>}, {transform_indices = @transform_1, window_bounds = array<i64: 4, 8>}]} {
    %c0 = arith.constant 0 : index
    %c0_0 = arith.constant 0 : index
    %c0_1 = arith.constant 0 : index
    %c0_2 = arith.constant 0 : index
    %0 = vector.load %arg1[%c0, %c0_0, %c0_1, %c0_2] : memref<4x4x8x128xf32, #tpu.memory_space<vmem>>, vector<4x4x8x128xf32>
    %cst = arith.constant dense<0xFF800000> : vector<4x4x8xf32>
    %1 = vector.multi_reduction <maximumf>, %0, %cst [3] : vector<4x4x8x128xf32> to vector<4x4x8xf32>
    %2 = tpu.iota {dimensions = array<i32: 0>} : vector<4x4x8xi32>
    %3 = tpu.iota {dimensions = array<i32: 1>} : vector<4x4x8xi32>
    %4 = arith.cmpi eq, %2, %3 : vector<4x4x8xi32>
    %cst_3 = arith.constant 0.000000e+00 : f32
    %5 = vector.broadcast %cst_3 : f32 to vector<4x4x8xf32>
    %6 = arith.select %4, %1, %5 : vector<4x4x8xi1>, vector<4x4x8xf32>
    %cst_4 = arith.constant dense<0.000000e+00> : vector<4x8xf32>
    %7 = vector.multi_reduction <add>, %6, %cst_4 [1] : vector<4x4x8xf32> to vector<4x8xf32>
    %c0_5 = arith.constant 0 : index
    %c0_6 = arith.constant 0 : index
    %8 = vector.load %arg2[%c0_5, %c0_6] : memref<4x8xf32, #tpu.memory_space<vmem>>, vector<4x8xf32>
    tpu.vector_store %arg2[%c0_5, %c0_6], %7 {strides = array<i32>} : memref<4x8xf32, #tpu.memory_space<vmem>>, vector<4x8xf32>,
    return
  }
  func.func @transform_0(%arg0: i32) -> (i32, i32, i32, i32) {
    %c0_i32 = arith.constant 0 : i32
    %c0_i32_0 = arith.constant 0 : i32
    %c0_i32_1 = arith.constant 0 : i32
    return %arg0, %arg0, %c0_i32, %c0_i32_0 : i32, i32, i32, i32
  }
  func.func @transform_1(%arg0: i32) -> (i32, i32) {
    %c0_i32 = arith.constant 0 : i32
    %c0_i32_0 = arith.constant 0 : i32
    return %arg0, %c0_i32 : i32, i32
  }
}

</mosaic_0001>

<llo_original>
// kernel: tpu_custom_call.1
$region0: #{tpu_custom_call.1}
  #allocation0 [shape = 'u32[]', space=smem, size = 0x4, offset = 0x4, fixed_abs, tag = 'smem constant byte address 0x4 - core index']
  #allocation1 [shape = 'u32[72,128]{1,0:T(1,128)}', space=vmem, size = 0x9000, scoped, tag = 'internal scratch']
  %s0 = inlined_call_operand.hbm [shape: f32[4,4,8,128], index: 0, kind: input, shape index: {}]
  %s1 = inlined_call_operand.hbm [shape: f32[4,8], index: 1, kind: output, shape index: {}]
  %s2 = sld [smem:[#allocation0]]
  $region18: #{tpu_custom_call.1} parent=0
    _
  %s4 = ssub.s32 1, %s2
  %s5 = scalar_select 0, %s4, %s2
  $region1: #{tpu_custom_call.1} parent=0
    #allocation2 [shape = 'u8[65536]{0}', space=vmem, size = 0x10000, scoped, tag = 'input window, operand 0, single buffered']
    #allocation3 [shape = 's32[1]{0}', space=sflag, size = 0x4, scoped, tag = 'scoped memory for tpu_custom_call.1']
    #allocation4 [shape = 's32[1]{0}', space=sflag, size = 0x4, scoped, tag = 'scoped memory for tpu_custom_call.1']
    #allocation5 [shape = 'u8[2048]{0}', space=vmem, size = 0x800, scoped, tag = 'output window, operand 0, single buffered']
    %6 = vsyncpa [#allocation3], 0
    %7 = vsyncpa [#allocation4], 0
    // Predicated region
    $region2: #{tpu_custom_call.1} parent=1 // pred_check
      _
    $region3: #{tpu_custom_call.1} parent=1 // pred_check_branch
      %9 = sbr.rel (0) target = $region5
    $region4: #{tpu_custom_call.1} parent=1 // pred_region
      %11 = vsyncadd [#allocation3], 0
      %s12 = sshll.u32 %s0, 4
      %s13 = int_to_ptr.hbm [resolvable:$true] %s12
      %s14 = sshll.u32 [#allocation2], 4
      %s15 = int_to_ptr.vmem [resolvable:$true] %s14
      %20 = dma.hbm_to_vmem [thread:$0]  %s13, 2048, %s15, [#allocation3], 128, 128, 8
    $region5: #{tpu_custom_call.1} parent=1 // pred_fallthru
      _
    // Predicated region
    $region6: #{tpu_custom_call.1} parent=1 // pred_check
      _
    $region7: #{tpu_custom_call.1} parent=1 // pred_check_branch
      %22 = sbr.rel (0) target = $region9
    $region8: #{tpu_custom_call.1} parent=1 // pred_region
      %24 = dma.done [#allocation3], 2048
    $region9: #{tpu_custom_call.1} parent=1 // pred_fallthru
      _
    %v25 = vld [vmem:[#allocation2] sm:$0xff]
    %v26 = vld [vmem:[#allocation2 + $0x8] sm:$0xff]
    %v27 = vld [vmem:[#allocation2 + $0x10] sm:$0xff]
    %v28 = vld [vmem:[#allocation2 + $0x18] sm:$0xff]
    %v29 = vld [vmem:[#allocation2 + $0x20] sm:$0xff]
    %v30 = vld [vmem:[#allocation2 + $0x28] sm:$0xff]
    %v31 = vld [vmem:[#allocation2 + $0x30] sm:$0xff]
    %v32 = vld [vmem:[#allocation2 + $0x38] sm:$0xff]
    %v33 = vld [vmem:[#allocation2 + $0x40] sm:$0xff]
    %v34 = vld [vmem:[#allocation2 + $0x48] sm:$0xff]
    %v35 = vld [vmem:[#allocation2 + $0x50] sm:$0xff]
    %v36 = vld [vmem:[#allocation2 + $0x58] sm:$0xff]
    %v37 = vld [vmem:[#allocation2 + $0x60] sm:$0xff]
    %v38 = vld [vmem:[#allocation2 + $0x68] sm:$0xff]
    %v39 = vld [vmem:[#allocation2 + $0x70] sm:$0xff]
    %v40 = vld [vmem:[#allocation2 + $0x78] sm:$0xff]
    %41 = vmax.xlane.f32.xlu0 %v25
    %v42 = vpop.xlane.xlu0 %41
    %43 = vmax.xlane.f32.xlu0 %v26
    %v44 = vpop.xlane.xlu0 %43
    %45 = vmax.xlane.f32.xlu0 %v27
    %v46 = vpop.xlane.xlu0 %45
    %47 = vmax.xlane.f32.xlu0 %v28
    %v48 = vpop.xlane.xlu0 %47
    %49 = vmax.xlane.f32.xlu0 %v29
    %v50 = vpop.xlane.xlu0 %49
    %51 = vmax.xlane.f32.xlu0 %v30
    %v52 = vpop.xlane.xlu0 %51
    %53 = vmax.xlane.f32.xlu0 %v31
    %v54 = vpop.xlane.xlu0 %53
    %55 = vmax.xlane.f32.xlu0 %v32
    %v56 = vpop.xlane.xlu0 %55
    %57 = vmax.xlane.f32.xlu0 %v33
    %v58 = vpop.xlane.xlu0 %57
    %59 = vmax.xlane.f32.xlu0 %v34
    %v60 = vpop.xlane.xlu0 %59
    %61 = vmax.xlane.f32.xlu0 %v35
    %v62 = vpop.xlane.xlu0 %61
    %63 = vmax.xlane.f32.xlu0 %v36
    %v64 = vpop.xlane.xlu0 %63
    %65 = vmax.xlane.f32.xlu0 %v37
    %v66 = vpop.xlane.xlu0 %65
    %67 = vmax.xlane.f32.xlu0 %v38
    %v68 = vpop.xlane.xlu0 %67
    %69 = vmax.xlane.f32.xlu0 %v39
    %v70 = vpop.xlane.xlu0 %69
    %71 = vmax.xlane.f32.xlu0 %v40
    %v72 = vpop.xlane.xlu0 %71
    %v73 = vlaneseq
    %v74 = vshrl.u32 %v73, 7
    %vm75 = vcmp.eq.s32.totalorder %v74, 0
    %vm76 = vcmp.eq.s32.totalorder %v74, 1
    %vm77 = vcmp.eq.s32.totalorder %v74, 2
    %vm78 = vcmp.eq.s32.totalorder %v74, 3
    %v95 = vlaneseq
    %v96 = vand.u32 %v95, 127
    %v97 = vperm.slane %v42, %v96
    %v98 = vperm.slane %v44, %v96
    %v99 = vperm.slane %v46, %v96
    %v100 = vperm.slane %v48, %v96
    %v101 = vperm.slane %v50, %v96
    %v102 = vperm.slane %v52, %v96
    %v103 = vperm.slane %v54, %v96
    %v104 = vperm.slane %v56, %v96
    %v105 = vperm.slane %v58, %v96
    %v106 = vperm.slane %v60, %v96
    %v107 = vperm.slane %v62, %v96
    %v108 = vperm.slane %v64, %v96
    %v109 = vperm.slane %v66, %v96
    %v110 = vperm.slane %v68, %v96
    %v111 = vperm.slane %v70, %v96
    %v112 = vperm.slane %v72, %v96
    %vm113 = vcmask 1041409
    %v114 = vsel %vm113, %v98, %v97
    %vm115 = vcmask 1042434
    %v116 = vsel %vm115, %v99, %v114
    %vm117 = vcmask 1043459
    %v118 = vsel %vm117, %v100, %v116
    %v119 = vsel %vm113, %v102, %v101
    %v120 = vsel %vm115, %v103, %v119
    %v121 = vsel %vm117, %v104, %v120
    %v122 = vsel %vm113, %v106, %v105
    %v123 = vsel %vm115, %v107, %v122
    %v124 = vsel %vm117, %v108, %v123
    %v125 = vsel %vm113, %v110, %v109
    %v126 = vsel %vm115, %v111, %v125
    %v127 = vsel %vm117, %v112, %v126
    %v132 = vsel %vm75, %v118, 0.0
    %v133 = vsel %vm76, %v121, 0.0
    %v134 = vsel %vm77, %v124, 0.0
    %v135 = vsel %vm78, %v127, 0.0
    %vm136 = vcmask 60416
    %v137 = vsel %vm136, %v132, 0.0
    %v138 = vrot.slane %v137, 4
    %v139 = vadd.f32 %v137, %v138
    %v140 = vrot.slane %v139, 2
    %v141 = vadd.f32 %v139, %v140
    %v142 = vrot.slane %v141, 1
    %v143 = vadd.f32 %v141, %v142
    %v144 = vsel %vm136, %v133, 0.0
    %v145 = vrot.slane %v144, 4
    %v146 = vadd.f32 %v144, %v145
    %v147 = vrot.slane %v146, 2
    %v148 = vadd.f32 %v146, %v147
    %v149 = vrot.slane %v148, 1
    %v150 = vadd.f32 %v148, %v149
    %v151 = vsel %vm136, %v134, 0.0
    %v152 = vrot.slane %v151, 4
    %v153 = vadd.f32 %v151, %v152
    %v154 = vrot.slane %v153, 2
    %v155 = vadd.f32 %v153, %v154
    %v156 = vrot.slane %v155, 1
    %v157 = vadd.f32 %v155, %v156
    %v158 = vsel %vm136, %v135, 0.0
    %v159 = vrot.slane %v158, 4
    %v160 = vadd.f32 %v158, %v159
    %v161 = vrot.slane %v160, 2
    %v162 = vadd.f32 %v160, %v161
    %v163 = vrot.slane %v162, 1
    %v164 = vadd.f32 %v162, %v163
    %v169 = vsel %vm113, %v150, %v143
    %v170 = vsel %vm115, %v157, %v169
    %v171 = vsel %vm117, %v164, %v170
    %173 = vst.msk [vmem:[#allocation5] sm:$0xf] %vm136, %v171
    // Predicated region
    $region10: #{tpu_custom_call.1} parent=1 // pred_check
      _
    $region11: #{tpu_custom_call.1} parent=1 // pred_check_branch
      %175 = sbr.rel (0) target = $region13
    $region12: #{tpu_custom_call.1} parent=1 // pred_region
      %177 = vsyncadd [#allocation4], 0
      %s179 = sshll.u32 [#allocation5], 4
      %s180 = int_to_ptr.vmem [resolvable:$true] %s179
      %s181 = sshll.u32 %s1, 4
      %s182 = int_to_ptr.hbm [resolvable:$true] %s181
      %184 = dma.vmem_to_hbm [thread:$0]  %s180, 64, %s182, [#allocation4]
    $region13: #{tpu_custom_call.1} parent=1 // pred_fallthru
      _
    // Predicated region
    $region14: #{tpu_custom_call.1} parent=1 // pred_check
      _
    $region15: #{tpu_custom_call.1} parent=1 // pred_check_branch
      %186 = sbr.rel (0) target = $region17
    $region16: #{tpu_custom_call.1} parent=1 // pred_region
      %188 = dma.done [#allocation4], 64
    $region17: #{tpu_custom_call.1} parent=1 // pred_fallthru
      _
    %189 = vsyncpa [#allocation3], 1
    %190 = vsyncpa [#allocation4], 1

</llo_original>
